<compile_context>
chip_gen: v7x
topology: tpu7x:2x2x1
jax: 0.10.0
libtpu: 0.0.40
codegen_flags: <defaults>
</compile_context>

<pallas_src>
import jax
import jax.numpy as jnp
from jax import lax
from jax.experimental import pallas as pl
from jax.experimental.pallas import tpu as pltpu


# --------------------------------------------------------------------------- #
# helpers
# --------------------------------------------------------------------------- #
def _round_up(x, m):
    return ((x + m - 1) // m) * m


def _cdiv(a, b):
    return (a + b - 1) // b


def _sublane_pack(dtype):
    # rows per vreg sublane group: f32 -> 8, bf16 -> 16, int8/fp8 -> 32
    return {4: 8, 2: 16, 1: 32}.get(jnp.dtype(dtype).itemsize, 8)


def _vmem_capacity_bytes():
    """Physical VMEM per TensorCore (v5e/v6e: 128 MiB, v7x: 64 MiB)."""
    try:
        cap = getattr(pltpu.get_tpu_info(), "vmem_capacity_bytes", None)
        if cap:
            return int(cap)
    except Exception:
        pass
    return 128 << 20


def _estimate_vmem_bytes(tm, tk, n_k, d_model, act_size, w_size):
    """Conservative estimate (assumes double buffering on every operand)."""
    b = 0
    b += 2 * tm * d_model * act_size          # x tile
    b += 2 * tm * d_model * act_size          # out tile
    b += 2 * d_model * tk * w_size            # W1 chunk
    b += 2 * tk * w_size                      # b1 chunk
    b += 2 * tk * d_model * w_size            # W2 chunk
    b += 2 * 3 * d_model * w_size             # b2 / gamma / beta
    if n_k > 1:
        b += tm * d_model * 4                 # f32 accumulator scratch
    b += tm * tk * 4                          # fc1 intermediate (f32)
    b += 2 * tm * d_model * 4                 # f32 residual / LayerNorm temporaries
    return b


def _choose_tiles(N, d_model, d_ff, act_size, w_size, tm_req, tk_req, budget, pack):
    def est(tm, tk, n_k):
        return _estimate_vmem_bytes(tm, tk, n_k, d_model, act_size, w_size)

    def clamp_rows(t):
        t = min(t, _round_up(N, pack))
        if N >= 2 * pack:                      # >= 2 row tiles so "parallel" axis
            t = min(t, _round_up(_cdiv(N, 2), pack))   # can shard across v7x TCs
        return max(pack, _round_up(t, pack))

    tm0 = clamp_rows(tm_req)

    if tk_req is not None:
        tk = d_ff if tk_req >= d_ff else tk_req
        if tk < d_ff:
            assert tk % 128 == 0, "tk must be a multiple of 128 when streaming d_ff"
        return tm0, tk

    # 1) Prefer full weight residency: W1/W2 fetched once per call instead of
    #    once per row tile (usually possible on v5e/v6e's 128 MiB VMEM).
    tm_c = tm0
    while True:
        if est(tm_c, d_ff, 1) <= budget:
            return tm_c, d_ff
        nxt = max(pack, _round_up(tm_c // 2, pack))
        if nxt >= tm_c or nxt < 128:
            break
        tm_c = nxt

    # 2) Stream d_ff chunks: keep the row tile large (per-step arithmetic
    #    intensity ~ tm FLOP/byte against re-streamed weights), shrink the chunk.
    tm_c = tm0
    while True:
        tk_c = max(128, (min(d_ff, 4096) // 128) * 128)
        while tk_c > 128 and est(tm_c, tk_c, 2) > budget:
            tk_c -= 128
        if est(tm_c, tk_c, 2) <= budget:
            return tm_c, tk_c
        nxt = max(pack, _round_up(tm_c // 2, pack))
        if nxt >= tm_c:
            return tm_c, tk_c                  # smallest feasible config
        tm_c = nxt


# --------------------------------------------------------------------------- #
# kernels
# --------------------------------------------------------------------------- #
def _finalize(x, ffn, b2_ref, g_ref, beta_ref, o_ref):
    """residual + LayerNorm (eps=1e-6) + affine, all in f32, single write."""
    d_model = o_ref.shape[-1]
    inv_d = 1.0 / d_model
    y = x.astype(jnp.float32) + ffn + b2_ref[...].astype(jnp.float32)
    yc = y - jnp.sum(y, axis=-1, keepdims=True) * inv_d          # y - mean
    var = jnp.sum(yc * yc, axis=-1, keepdims=True) * inv_d
    norm = yc * lax.rsqrt(var + 1e-6)
    out = norm * g_ref[...].astype(jnp.float32) + beta_ref[...].astype(jnp.float32)
    # TODO(synk): training-mode dropout2 would mask `out` here (pltpu.prng_random_bits).
    o_ref[...] = out.astype(o_ref.dtype)


def _ffn_resident_kernel(x_ref, w1_ref, b1_ref, w2_ref, b2_ref, g_ref, beta_ref,
                         o_ref):
    """Weights fully resident (n_k == 1): no accumulator scratch, no RMW."""
    x = x_ref[...]
    h = jnp.dot(x, w1_ref[...], preferred_element_type=jnp.float32)
    h = jnp.maximum(h + b1_ref[...].astype(jnp.float32), 0.0)
    # TODO(synk): training-mode dropout1 would mask `h` here.
    ffn = jnp.dot(h.astype(w2_ref.dtype), w2_ref[...],
                  preferred_element_type=jnp.float32)
    _finalize(x, ffn, b2_ref, g_ref, beta_ref, o_ref)


def _ffn_streaming_kernel(x_ref, w1_ref, b1_ref, w2_ref, b2_ref, g_ref, beta_ref,
                          o_ref, acc_ref):
    """d_ff streamed in chunks; fc2 partials accumulated in f32 VMEM scratch."""
    k = pl.program_id(1)

    @pl.when(k == 0)
    def _():
        acc_ref[...] = jnp.zeros_like(acc_ref)

    h = jnp.dot(x_ref[...], w1_ref[...], preferred_element_type=jnp.float32)
    h = jnp.maximum(h + b1_ref[...].astype(jnp.float32), 0.0)
    # TODO(synk): training-mode dropout1 would mask `h` here.
    acc_ref[...] += jnp.dot(h.astype(w2_ref.dtype), w2_ref[...],
                            preferred_element_type=jnp.float32)

    @pl.when(k == pl.num_programs(1) - 1)
    def _():
        _finalize(x_ref[...], acc_ref[...], b2_ref, g_ref, beta_ref, o_ref)


# --------------------------------------------------------------------------- #
# wrapper
# --------------------------------------------------------------------------- #
def positionwise_feed_forward(x, w1, b1, w2, b2, gamma, beta, *,
                              tm=None, tk=None, matmul_dtype=None):
    """Fused fc1 -> ReLU -> fc2 -> residual -> LayerNorm (dropout = identity).

    x:   (B, S, d_model)
    w1:  (d_model, d_ff)  fc1 weight, pre-transposed from torch's (d_ff, d_model)
    b1:  (d_ff,)
    w2:  (d_ff, d_model)  fc2 weight, pre-transposed
    b2, gamma, beta: (d_model,)
    matmul_dtype: optionally cast x/W1/W2 (e.g. jnp.bfloat16) so the MXU runs at
      its native bf16 rate; accumulation/bias/residual/LayerNorm stay f32.
    """
    if matmul_dtype is not None:
        x = x.astype(matmul_dtype)
        w1 = w1.astype(matmul_dtype)
        w2 = w2.astype(matmul_dtype)

    B, S, d_model = x.shape
    d_ff = w1.shape[1]
    N = B * S

    act_size = jnp.dtype(x.dtype).itemsize
    w_size = jnp.dtype(w1.dtype).itemsize
    pack = max(_sublane_pack(x.dtype), _sublane_pack(w1.dtype))

    cap = _vmem_capacity_bytes()
    budget = int(cap * 0.70)                        # headroom for compiler scratch
    tm_default = 1024 if cap >= (96 << 20) else 512  # v5e/v6e vs v7x roofline targets
    tm_eff, tk_eff = _choose_tiles(
        N, d_model, d_ff, act_size, w_size,
        tm if tm is not None else tm_default, tk, budget, pack)

    n_k = _cdiv(d_ff, tk_eff)
    d_ff_pad = n_k * tk_eff
    if d_ff_pad != d_ff:
        # Zero-pad the reduction dim: padded h columns are relu(x@0 + 0) = 0 and
        # hit zero rows of W2, so they contribute nothing.
        w1 = jnp.pad(w1, ((0, 0), (0, d_ff_pad - d_ff)))
        b1 = jnp.pad(b1, ((0, d_ff_pad - d_ff),))
        w2 = jnp.pad(w2, ((0, d_ff_pad - d_ff), (0, 0)))

    # No row padding: the row grid overhangs N and Pallas masks the ragged tile.
    x2 = x.reshape(N, d_model)
    b1_2 = b1.reshape(1, d_ff_pad)
    b2_2 = b2.reshape(1, d_model)
    g_2 = gamma.reshape(1, d_model)
    beta_2 = beta.reshape(1, d_model)

    n_rows = _cdiv(N, tm_eff)
    est = _estimate_vmem_bytes(tm_eff, tk_eff, n_k, d_model, act_size, w_size)
    vmem_limit = min(max(int(est * 1.3) + (2 << 20), 32 << 20), int(cap * 0.85))

    def build_and_run(single_buffer_consts):
        def const_spec(shape, index_map):
            # Constant-index operands are never re-fetched; single-buffering them
            # reclaims VMEM (most valuable on v7x's 64 MiB per-core VMEM).
            if single_buffer_consts:
                try:
                    return pl.BlockSpec(shape, index_map,
                                        pipeline_mode=pl.Buffered(1))
                except Exception:
                    pass
            return pl.BlockSpec(shape, index_map)

        if n_k == 1:
            grid = (n_rows,)
            in_specs = [
                pl.BlockSpec((tm_eff, d_model), lambda i: (i, 0)),      # x rows
                const_spec((d_model, tk_eff), lambda i: (0, 0)),        # W1 (resident)
                const_spec((1, tk_eff), lambda i: (0, 0)),              # b1
                const_spec((tk_eff, d_model), lambda i: (0, 0)),        # W2 (resident)
                const_spec((1, d_model), lambda i: (0, 0)),             # b2
                const_spec((1, d_model), lambda i: (0, 0)),             # gamma
                const_spec((1, d_model), lambda i: (0, 0)),             # beta
            ]
            out_spec = pl.BlockSpec((tm_eff, d_model), lambda i: (i, 0))
            kernel, scratch = _ffn_resident_kernel, []
            semantics = ("parallel",)
        else:
            grid = (n_rows, n_k)
            in_specs = [
                pl.BlockSpec((tm_eff, d_model), lambda i, k: (i, 0)),   # x rows
                pl.BlockSpec((d_model, tk_eff), lambda i, k: (0, k)),   # W1 chunk
                pl.BlockSpec((1, tk_eff), lambda i, k: (0, k)),         # b1 chunk
                pl.BlockSpec((tk_eff, d_model), lambda i, k: (k, 0)),   # W2 chunk
                const_spec((1, d_model), lambda i, k: (0, 0)),          # b2
                const_spec((1, d_model), lambda i, k: (0, 0)),          # gamma
                const_spec((1, d_model), lambda i, k: (0, 0)),          # beta
            ]
            out_spec = pl.BlockSpec((tm_eff, d_model), lambda i, k: (i, 0))
            kernel = _ffn_streaming_kernel
            scratch = [pltpu.VMEM((tm_eff, d_model), jnp.float32)]
            semantics = ("parallel", "arbitrary")

        return pl.pallas_call(
            kernel,
            out_shape=jax.ShapeDtypeStruct((N, d_model), x.dtype),
            grid_spec=pltpu.PrefetchScalarGridSpec(
                num_scalar_prefetch=0,
                grid=grid,
                in_specs=in_specs,
                out_specs=out_spec,
                scratch_shapes=scratch,
            ),
            compiler_params=pltpu.CompilerParams(
                dimension_semantics=semantics,
                vmem_limit_bytes=vmem_limit,
            ),
        )(x2, w1, b1_2, w2, b2_2, g_2, beta_2)

    try:
        out2 = build_and_run(single_buffer_consts=True)
    except Exception:
        # pl.Buffered(1) single-buffering unsupported on this jax version/config:
        # retry with default double buffering.
        out2 = build_and_run(single_buffer_consts=False)

    return out2.reshape(B, S, d_model)


# --------------------------------------------------------------------------- #
# reference + tests
# --------------------------------------------------------------------------- #
def _reference(x, w1, b1, w2, b2, gamma, beta):
    xf = x.astype(jnp.float32)
    h = jnp.maximum(xf @ w1.astype(jnp.float32) + b1.astype(jnp.float32), 0.0)
    ffn = h @ w2.astype(jnp.float32) + b2.astype(jnp.float32)
    y = xf + ffn
    mean = jnp.mean(y, axis=-1, keepdims=True)
    var = jnp.mean((y - mean) ** 2, axis=-1, keepdims=True)
    return ((y - mean) / jnp.sqrt(var + 1e-6)
            * gamma.astype(jnp.float32) + beta.astype(jnp.float32))


if __name__ == "__main__":
    key = jax.random.PRNGKey(0)

    # ---- test 1: small module-consistent shapes, f32, auto (weight-resident) ----
    B, S, d_model, d_ff = 2, 8, 32, 64
    ks = jax.random.split(key, 5)
    std1 = (2.0 / (d_model + d_ff)) ** 0.5            # xavier_normal_
    std2 = (2.0 / (d_ff + d_model)) ** 0.5
    w1 = jax.random.normal(ks[0], (d_model, d_ff), jnp.float32) * std1
    w2 = jax.random.normal(ks[1], (d_ff, d_model), jnp.float32) * std2
    b1 = jax.random.uniform(ks[2], (d_ff,), jnp.float32, -d_model ** -0.5, d_model ** -0.5)
    b2 = jax.random.uniform(ks[3], (d_model,), jnp.float32, -d_ff ** -0.5, d_ff ** -0.5)
    gamma = jnp.ones((d_model,), jnp.float32)
    beta = jnp.zeros((d_model,), jnp.float32)
    x = jax.random.normal(ks[4], (B, S, d_model), jnp.float32)

    out = jax.block_until_ready(positionwise_feed_forward(x, w1, b1, w2, b2, gamma, beta))
    ref = _reference(x, w1, b1, w2, b2, gamma, beta)
    assert out.shape == (B, S, d_model)
    # tolerance covers MXU f32 multi-pass rounding
    assert jnp.allclose(out, ref, atol=1e-2, rtol=1e-2), "f32 resident-path mismatch"

    # ---- test 2: streaming (n_k>1), ragged last row tile, zero-padded d_ff ------
    B2, S2, dm2, dff2 = 2, 72, 128, 320   # N=144 -> tiles 64+64+16; d_ff pads 320->384
    k2 = jax.random.split(key, 6)
    w1b = jax.random.normal(k2[0], (dm2, dff2), jnp.float32) * (2.0 / (dm2 + dff2)) ** 0.5
    w2b = jax.random.normal(k2[1], (dff2, dm2), jnp.float32) * (2.0 / (dff2 + dm2)) ** 0.5
    b1b = jax.random.uniform(k2[2], (dff2,), jnp.float32, -0.05, 0.05)
    b2b = jax.random.uniform(k2[3], (dm2,), jnp.float32, -0.05, 0.05)
    gb = jax.random.normal(k2[4], (dm2,), jnp.float32) * 0.1 + 1.0
    bb = jax.random.normal(k2[5], (dm2,), jnp.float32) * 0.1
    xb = jax.random.normal(jax.random.fold_in(key, 7), (B2, S2, dm2), jnp.float32)

    out_b = jax.block_until_ready(
        positionwise_feed_forward(xb, w1b, b1b, w2b, b2b, gb, bb, tm=64, tk=128))
    ref_b = _reference(xb, w1b, b1b, w2b, b2b, gb, bb)
    assert jnp.allclose(out_b, ref_b, atol=1e-2, rtol=1e-2), "f32 streaming-path mismatch"

    # ---- test 3: bf16 MXU-native path via matmul_dtype auto-cast ----------------
    out_bf = jax.block_until_ready(
        positionwise_feed_forward(xb, w1b, b1b, w2b, b2b, gb, bb,
                                  tm=64, tk=128, matmul_dtype=jnp.bfloat16))
    assert jnp.allclose(out_bf.astype(jnp.float32), ref_b, atol=0.15, rtol=0.15), \
        "bf16 path mismatch"

    # ---- test 4: fully automatic tiling on the same problem ---------------------
    out_c = jax.block_until_ready(
        positionwise_feed_forward(xb, w1b, b1b, w2b, b2b, gb, bb))
    assert jnp.allclose(out_c, ref_b, atol=1e-2, rtol=1e-2), "auto-tiling mismatch"

    print("KERNEL_OK")
</pallas_src>

<mosaic_0001>
module attributes {stable_mosaic.version = 11 : i64} {
  func.func @_ffn_resident_kernel(%arg0: i32, %arg1: memref<8x32xf32, #tpu.memory_space<vmem>>, %arg2: memref<32x64xf32, #tpu.memory_space<vmem>>, %arg3: memref<1x64xf32, #tpu.memory_space<vmem>>, %arg4: memref<64x32xf32, #tpu.memory_space<vmem>>, %arg5: memref<1x32xf32, #tpu.memory_space<vmem>>, %arg6: memref<1x32xf32, #tpu.memory_space<vmem>>, %arg7: memref<1x32xf32, #tpu.memory_space<vmem>>, %arg8: memref<8x32xf32, #tpu.memory_space<vmem>>) attributes {dimension_semantics = [#tpu.dimension_semantics<parallel>], iteration_bounds = array<i64: 2>, scalar_prefetch = 0 : i64, scratch_operands = 0 : i64, tpu.core_type = #tpu.core_type<tc>, window_params = [{transform_indices = @transform_0, window_bounds = array<i64: 8, 32>}, {pipeline_mode = #tpu.pipeline_mode<synchronous>, transform_indices = @transform_1, window_bounds = array<i64: 32, 64>}, {pipeline_mode = #tpu.pipeline_mode<synchronous>, transform_indices = @transform_2, window_bounds = array<i64: 1, 64>}, {pipeline_mode = #tpu.pipeline_mode<synchronous>, transform_indices = @transform_3, window_bounds = array<i64: 64, 32>}, {pipeline_mode = #tpu.pipeline_mode<synchronous>, transform_indices = @transform_4, window_bounds = array<i64: 1, 32>}, {pipeline_mode = #tpu.pipeline_mode<synchronous>, transform_indices = @transform_5, window_bounds = array<i64: 1, 32>}, {pipeline_mode = #tpu.pipeline_mode<synchronous>, transform_indices = @transform_6, window_bounds = array<i64: 1, 32>}, {transform_indices = @transform_7, window_bounds = array<i64: 8, 32>}]} {
    %c0 = arith.constant 0 : index
    %c0_0 = arith.constant 0 : index
    %0 = vector.load %arg1[%c0, %c0_0] : memref<8x32xf32, #tpu.memory_space<vmem>>, vector<8x32xf32>
    %c0_1 = arith.constant 0 : index
    %c0_2 = arith.constant 0 : index
    %1 = vector.load %arg2[%c0_1, %c0_2] : memref<32x64xf32, #tpu.memory_space<vmem>>, vector<32x64xf32>
    %cst = arith.constant dense<0.000000e+00> : vector<8x64xf32>
    %2 = tpu.matmul %0, %1, %cst {dimension_numbers = #tpu.dot_dimension_numbers<[1], [0], [0], [1], [0, 0, 1, 1], [], []>} : vector<8x32xf32>, vector<32x64xf32>, vector<8x64xf32> -> vector<8x64xf32>
    %c0_3 = arith.constant 0 : index
    %c0_4 = arith.constant 0 : index
    %3 = vector.load %arg3[%c0_3, %c0_4] : memref<1x64xf32, #tpu.memory_space<vmem>>, vector<1x64xf32>
    %4 = vector.broadcast %3 : vector<1x64xf32> to vector<8x64xf32>
    %5 = arith.addf %2, %4 : vector<8x64xf32>
    %cst_5 = arith.constant 0.000000e+00 : f32
    %6 = vector.broadcast %cst_5 : f32 to vector<8x64xf32>
    %7 = arith.maximumf %5, %6 : vector<8x64xf32>
    %c0_6 = arith.constant 0 : index
    %c0_7 = arith.constant 0 : index
    %8 = vector.load %arg4[%c0_6, %c0_7] : memref<64x32xf32, #tpu.memory_space<vmem>>, vector<64x32xf32>
    %cst_8 = arith.constant dense<0.000000e+00> : vector<8x32xf32>
    %9 = tpu.matmul %7, %8, %cst_8 {dimension_numbers = #tpu.dot_dimension_numbers<[1], [0], [0], [1], [0, 0, 1, 1], [], []>} : vector<8x64xf32>, vector<64x32xf32>, vector<8x32xf32> -> vector<8x32xf32>
    %10 = arith.addf %0, %9 : vector<8x32xf32>
    %c0_9 = arith.constant 0 : index
    %c0_10 = arith.constant 0 : index
    %11 = vector.load %arg5[%c0_9, %c0_10] : memref<1x32xf32, #tpu.memory_space<vmem>>, vector<1x32xf32>
    %12 = vector.broadcast %11 : vector<1x32xf32> to vector<8x32xf32>
    %13 = arith.addf %10, %12 : vector<8x32xf32>
    %cst_11 = arith.constant dense<0.000000e+00> : vector<8xf32>
    %14 = vector.multi_reduction <add>, %13, %cst_11 [1] : vector<8x32xf32> to vector<8xf32>
    %15 = vector.shape_cast %14 : vector<8xf32> to vector<8x1xf32>
    %cst_12 = arith.constant 3.125000e-02 : f32
    %16 = vector.broadcast %cst_12 : f32 to vector<8x1xf32>
    %17 = arith.mulf %15, %16 : vector<8x1xf32>
    %18 = vector.broadcast %17 : vector<8x1xf32> to vector<8x32xf32>
    %19 = arith.subf %13, %18 : vector<8x32xf32>
    %20 = arith.mulf %19, %19 : vector<8x32xf32>
    %cst_13 = arith.constant dense<0.000000e+00> : vector<8xf32>
    %21 = vector.multi_reduction <add>, %20, %cst_13 [1] : vector<8x32xf32> to vector<8xf32>
    %22 = vector.shape_cast %21 : vector<8xf32> to vector<8x1xf32>
    %cst_14 = arith.constant 3.125000e-02 : f32
    %23 = vector.broadcast %cst_14 : f32 to vector<8x1xf32>
    %24 = arith.mulf %22, %23 : vector<8x1xf32>
    %cst_15 = arith.constant 9.99999997E-7 : f32
    %25 = vector.broadcast %cst_15 : f32 to vector<8x1xf32>
    %26 = arith.addf %24, %25 : vector<8x1xf32>
    %27 = math.rsqrt %26 : vector<8x1xf32>
    %28 = vector.broadcast %27 : vector<8x1xf32> to vector<8x32xf32>
    %29 = arith.mulf %19, %28 : vector<8x32xf32>
    %c0_16 = arith.constant 0 : index
    %c0_17 = arith.constant 0 : index
    %30 = vector.load %arg6[%c0_16, %c0_17] : memref<1x32xf32, #tpu.memory_space<vmem>>, vector<1x32xf32>
    %31 = vector.broadcast %30 : vector<1x32xf32> to vector<8x32xf32>
    %32 = arith.mulf %29, %31 : vector<8x32xf32>
    %c0_18 = arith.constant 0 : index
    %c0_19 = arith.constant 0 : index
    %33 = vector.load %arg7[%c0_18, %c0_19] : memref<1x32xf32, #tpu.memory_space<vmem>>, vector<1x32xf32>
    %34 = vector.broadcast %33 : vector<1x32xf32> to vector<8x32xf32>
    %35 = arith.addf %32, %34 : vector<8x32xf32>
    %c0_20 = arith.constant 0 : index
    %c0_21 = arith.constant 0 : index
    %36 = vector.load %arg8[%c0_20, %c0_21] : memref<8x32xf32, #tpu.memory_space<vmem>>, vector<8x32xf32>
    tpu.vector_store %arg8[%c0_20, %c0_21], %35 {strides = array<i32>} : memref<8x32xf32, #tpu.memory_space<vmem>>, vector<8x32xf32>,
    return
  }
  func.func @transform_0(%arg0: i32) -> (i32, i32) {
    %c0_i32 = arith.constant 0 : i32
    %c0_i32_0 = arith.constant 0 : i32
    return %arg0, %c0_i32 : i32, i32
  }
  func.func @transform_1(%arg0: i32) -> (i32, i32) {
    %c0_i32 = arith.constant 0 : i32
    %c0_i32_0 = arith.constant 0 : i32
    %c0_i32_1 = arith.constant 0 : i32
    return %c0_i32, %c0_i32_0 : i32, i32
  }
  func.func @transform_2(%arg0: i32) -> (i32, i32) {
    %c0_i32 = arith.constant 0 : i32
    %c0_i32_0 = arith.constant 0 : i32
    %c0_i32_1 = arith.constant 0 : i32
    return %c0_i32, %c0_i32_0 : i32, i32
  }
  func.func @transform_3(%arg0: i32) -> (i32, i32) {
    %c0_i32 = arith.constant 0 : i32
    %c0_i32_0 = arith.constant 0 : i32
    %c0_i32_1 = arith.constant 0 : i32
    return %c0_i32, %c0_i32_0 : i32, i32
  }
  func.func @transform_4(%arg0: i32) -> (i32, i32) {
    %c0_i32 = arith.constant 0 : i32
    %c0_i32_0 = arith.constant 0 : i32
    %c0_i32_1 = arith.constant 0 : i32
    return %c0_i32, %c0_i32_0 : i32, i32
  }
  func.func @transform_5(%arg0: i32) -> (i32, i32) {
    %c0_i32 = arith.constant 0 : i32
    %c0_i32_0 = arith.constant 0 : i32
    %c0_i32_1 = arith.constant 0 : i32
    return %c0_i32, %c0_i32_0 : i32, i32
  }
  func.func @transform_6(%arg0: i32) -> (i32, i32) {
    %c0_i32 = arith.constant 0 : i32
    %c0_i32_0 = arith.constant 0 : i32
    %c0_i32_1 = arith.constant 0 : i32
    return %c0_i32, %c0_i32_0 : i32, i32
  }
  func.func @transform_7(%arg0: i32) -> (i32, i32) {
    %c0_i32 = arith.constant 0 : i32
    %c0_i32_0 = arith.constant 0 : i32
    return %arg0, %c0_i32 : i32, i32
  }
}

module attributes {stable_mosaic.version = 11 : i64} {
  func.func @_ffn_resident_kernel(%arg0: i32, %arg1: memref<8x32xf32, #tpu.memory_space<vmem>>, %arg2: memref<32x64xf32, #tpu.memory_space<vmem>>, %arg3: memref<1x64xf32, #tpu.memory_space<vmem>>, %arg4: memref<64x32xf32, #tpu.memory_space<vmem>>, %arg5: memref<1x32xf32, #tpu.memory_space<vmem>>, %arg6: memref<1x32xf32, #tpu.memory_space<vmem>>, %arg7: memref<1x32xf32, #tpu.memory_space<vmem>>, %arg8: memref<8x32xf32, #tpu.memory_space<vmem>>) attributes {dimension_semantics = [#tpu.dimension_semantics<parallel>], iteration_bounds = array<i64: 2>, scalar_prefetch = 0 : i64, scratch_operands = 0 : i64, tpu.core_type = #tpu.core_type<tc>, window_params = [{transform_indices = @transform_0, window_bounds = array<i64: 8, 32>}, {pipeline_mode = #tpu.pipeline_mode<synchronous>, transform_indices = @transform_1, window_bounds = array<i64: 32, 64>}, {pipeline_mode = #tpu.pipeline_mode<synchronous>, transform_indices = @transform_2, window_bounds = array<i64: 1, 64>}, {pipeline_mode = #tpu.pipeline_mode<synchronous>, transform_indices = @transform_3, window_bounds = array<i64: 64, 32>}, {pipeline_mode = #tpu.pipeline_mode<synchronous>, transform_indices = @transform_4, window_bounds = array<i64: 1, 32>}, {pipeline_mode = #tpu.pipeline_mode<synchronous>, transform_indices = @transform_5, window_bounds = array<i64: 1, 32>}, {pipeline_mode = #tpu.pipeline_mode<synchronous>, transform_indices = @transform_6, window_bounds = array<i64: 1, 32>}, {transform_indices = @transform_7, window_bounds = array<i64: 8, 32>}]} {
    %c0 = arith.constant 0 : index
    %c0_0 = arith.constant 0 : index
    %0 = vector.load %arg1[%c0, %c0_0] : memref<8x32xf32, #tpu.memory_space<vmem>>, vector<8x32xf32>
    %c0_1 = arith.constant 0 : index
    %c0_2 = arith.constant 0 : index
    %1 = vector.load %arg2[%c0_1, %c0_2] : memref<32x64xf32, #tpu.memory_space<vmem>>, vector<32x64xf32>
    %cst = arith.constant dense<0.000000e+00> : vector<8x64xf32>
    %2 = tpu.matmul %0, %1, %cst {dimension_numbers = #tpu.dot_dimension_numbers<[1], [0], [0], [1], [0, 0, 1, 1], [], []>} : vector<8x32xf32>, vector<32x64xf32>, vector<8x64xf32> -> vector<8x64xf32>
    %c0_3 = arith.constant 0 : index
    %c0_4 = arith.constant 0 : index
    %3 = vector.load %arg3[%c0_3, %c0_4] : memref<1x64xf32, #tpu.memory_space<vmem>>, vector<1x64xf32>
    %4 = vector.broadcast %3 : vector<1x64xf32> to vector<8x64xf32>
    %5 = arith.addf %2, %4 : vector<8x64xf32>
    %cst_5 = arith.constant 0.000000e+00 : f32
    %6 = vector.broadcast %cst_5 : f32 to vector<8x64xf32>
    %7 = arith.maximumf %5, %6 : vector<8x64xf32>
    %c0_6 = arith.constant 0 : index
    %c0_7 = arith.constant 0 : index
    %8 = vector.load %arg4[%c0_6, %c0_7] : memref<64x32xf32, #tpu.memory_space<vmem>>, vector<64x32xf32>
    %cst_8 = arith.constant dense<0.000000e+00> : vector<8x32xf32>
    %9 = tpu.matmul %7, %8, %cst_8 {dimension_numbers = #tpu.dot_dimension_numbers<[1], [0], [0], [1], [0, 0, 1, 1], [], []>} : vector<8x64xf32>, vector<64x32xf32>, vector<8x32xf32> -> vector<8x32xf32>
    %10 = arith.addf %0, %9 : vector<8x32xf32>
    %c0_9 = arith.constant 0 : index
    %c0_10 = arith.constant 0 : index
    %11 = vector.load %arg5[%c0_9, %c0_10] : memref<1x32xf32, #tpu.memory_space<vmem>>, vector<1x32xf32>
    %12 = vector.broadcast %11 : vector<1x32xf32> to vector<8x32xf32>
    %13 = arith.addf %10, %12 : vector<8x32xf32>
    %cst_11 = arith.constant dense<0.000000e+00> : vector<8xf32>
    %14 = vector.multi_reduction <add>, %13, %cst_11 [1] : vector<8x32xf32> to vector<8xf32>
    %15 = vector.shape_cast %14 : vector<8xf32> to vector<8x1xf32>
    %cst_12 = arith.constant 3.125000e-02 : f32
    %16 = vector.broadcast %cst_12 : f32 to vector<8x1xf32>
    %17 = arith.mulf %15, %16 : vector<8x1xf32>
    %18 = vector.broadcast %17 : vector<8x1xf32> to vector<8x32xf32>
    %19 = arith.subf %13, %18 : vector<8x32xf32>
    %20 = arith.mulf %19, %19 : vector<8x32xf32>
    %cst_13 = arith.constant dense<0.000000e+00> : vector<8xf32>
    %21 = vector.multi_reduction <add>, %20, %cst_13 [1] : vector<8x32xf32> to vector<8xf32>
    %22 = vector.shape_cast %21 : vector<8xf32> to vector<8x1xf32>
    %cst_14 = arith.constant 3.125000e-02 : f32
    %23 = vector.broadcast %cst_14 : f32 to vector<8x1xf32>
    %24 = arith.mulf %22, %23 : vector<8x1xf32>
    %cst_15 = arith.constant 9.99999997E-7 : f32
    %25 = vector.broadcast %cst_15 : f32 to vector<8x1xf32>
    %26 = arith.addf %24, %25 : vector<8x1xf32>
    %27 = math.rsqrt %26 : vector<8x1xf32>
    %28 = vector.broadcast %27 : vector<8x1xf32> to vector<8x32xf32>
    %29 = arith.mulf %19, %28 : vector<8x32xf32>
    %c0_16 = arith.constant 0 : index
    %c0_17 = arith.constant 0 : index
    %30 = vector.load %arg6[%c0_16, %c0_17] : memref<1x32xf32, #tpu.memory_space<vmem>>, vector<1x32xf32>
    %31 = vector.broadcast %30 : vector<1x32xf32> to vector<8x32xf32>
    %32 = arith.mulf %29, %31 : vector<8x32xf32>
    %c0_18 = arith.constant 0 : index
    %c0_19 = arith.constant 0 : index
    %33 = vector.load %arg7[%c0_18, %c0_19] : memref<1x32xf32, #tpu.memory_space<vmem>>, vector<1x32xf32>
    %34 = vector.broadcast %33 : vector<1x32xf32> to vector<8x32xf32>
    %35 = arith.addf %32, %34 : vector<8x32xf32>
    %c0_20 = arith.constant 0 : index
    %c0_21 = arith.constant 0 : index
    %36 = vector.load %arg8[%c0_20, %c0_21] : memref<8x32xf32, #tpu.memory_space<vmem>>, vector<8x32xf32>
    tpu.vector_store %arg8[%c0_20, %c0_21], %35 {strides = array<i32>} : memref<8x32xf32, #tpu.memory_space<vmem>>, vector<8x32xf32>,
    return
  }
  func.func @transform_0(%arg0: i32) -> (i32, i32) {
    %c0_i32 = arith.constant 0 : i32
    %c0_i32_0 = arith.constant 0 : i32
    return %arg0, %c0_i32 : i32, i32
  }
  func.func @transform_1(%arg0: i32) -> (i32, i32) {
    %c0_i32 = arith.constant 0 : i32
    %c0_i32_0 = arith.constant 0 : i32
    %c0_i32_1 = arith.constant 0 : i32
    return %c0_i32, %c0_i32_0 : i32, i32
  }
  func.func @transform_2(%arg0: i32) -> (i32, i32) {
    %c0_i32 = arith.constant 0 : i32
    %c0_i32_0 = arith.constant 0 : i32
    %c0_i32_1 = arith.constant 0 : i32
    return %c0_i32, %c0_i32_0 : i32, i32
  }
  func.func @transform_3(%arg0: i32) -> (i32, i32) {
    %c0_i32 = arith.constant 0 : i32
    %c0_i32_0 = arith.constant 0 : i32
    %c0_i32_1 = arith.constant 0 : i32
    return %c0_i32, %c0_i32_0 : i32, i32
  }
  func.func @transform_4(%arg0: i32) -> (i32, i32) {
    %c0_i32 = arith.constant 0 : i32
    %c0_i32_0 = arith.constant 0 : i32
    %c0_i32_1 = arith.constant 0 : i32
    return %c0_i32, %c0_i32_0 : i32, i32
  }
  func.func @transform_5(%arg0: i32) -> (i32, i32) {
    %c0_i32 = arith.constant 0 : i32
    %c0_i32_0 = arith.constant 0 : i32
    %c0_i32_1 = arith.constant 0 : i32
    return %c0_i32, %c0_i32_0 : i32, i32
  }
  func.func @transform_6(%arg0: i32) -> (i32, i32) {
    %c0_i32 = arith.constant 0 : i32
    %c0_i32_0 = arith.constant 0 : i32
    %c0_i32_1 = arith.constant 0 : i32
    return %c0_i32, %c0_i32_0 : i32, i32
  }
  func.func @transform_7(%arg0: i32) -> (i32, i32) {
    %c0_i32 = arith.constant 0 : i32
    %c0_i32_0 = arith.constant 0 : i32
    return %arg0, %c0_i32 : i32, i32
  }
}

</mosaic_0001>

<llo_original>
// kernel: tpu_custom_call.1
$region0: #{tpu_custom_call.1}
  #allocation0 [shape = 'u32[]', space=smem, size = 0x4, offset = 0x4, fixed_abs, tag = 'smem constant byte address 0x4 - core index']
  #allocation1 [shape = 'u32[144,128]{1,0:T(1,128)}', space=vmem, size = 0x12000, scoped, tag = 'internal scratch']
  %s0 = inlined_call_operand.vmem [shape: f32[16,32], index: 0, kind: input, shape index: {}]
  %s1 = inlined_call_operand.vmem [shape: f32[32,64], index: 1, kind: input, shape index: {}]
  %s2 = inlined_call_operand.vmem [shape: f32[1,64], index: 2, kind: input, shape index: {}]
  %s3 = inlined_call_operand.vmem [shape: f32[64,32], index: 3, kind: input, shape index: {}]
  %s4 = inlined_call_operand.vmem [shape: f32[1,32], index: 4, kind: input, shape index: {}]
  %s5 = inlined_call_operand.vmem [shape: f32[1,32], index: 5, kind: input, shape index: {}]
  %s6 = inlined_call_operand.vmem [shape: f32[1,32], index: 6, kind: input, shape index: {}]
  %s7 = inlined_call_operand.hbm [shape: f32[16,32], index: 7, kind: output, shape index: {}]
  %s8 = sld [smem:[#allocation0]]
  $region61: #{tpu_custom_call.1} parent=0
    _
  %s10 = ssub.s32 1, %s8
  %s11 = scalar_select 0, %s10, %s8
  $region1: #{tpu_custom_call.1} parent=0
    #allocation2 [shape = 'u8[8192]{0}', space=vmem, size = 0x2000, scoped, tag = 'output window, operand 0']
    #allocation3 [shape = 's32[2]{0}', space=sflag, size = 0x8, scoped, tag = 'scoped memory for tpu_custom_call.1']
    %12 = vsyncpa [#allocation3], 0
    %s13 = scalar_lea.sflag [#allocation3], 1
    %14 = vsyncpa %s13, 0
    loop: start=0, step=1, limit=4
    $region2: #{tpu_custom_call.1} parent=1 // loop_pre_header
      _
    $region3: #{tpu_custom_call.1} parent=1 // loop_header
      %s16 = sphi 0, %s20
      %p17 = scmp.ge.s32.totalorder %s16, 4
      %s26 = sphi 0, %s28
      %s29 = sphi 0, %s26
      %s30 = sphi 0, %s29
      %s46 = sphi 0, %s30
      %s50 = sphi 0, %s50
      %s52 = sphi 0, %s50
      %s53 = sphi 0, %s52
      %s67 = sphi 0, %s53
      %s71 = sphi 0, %s71
      %s73 = sphi 0, %s71
      %s74 = sphi 0, %s73
      %s88 = sphi 0, %s74
      %s92 = sphi 0, %s92
      %s94 = sphi 0, %s92
      %s95 = sphi 0, %s94
      %s109 = sphi 0, %s95
      %s113 = sphi 0, %s113
      %s115 = sphi 0, %s113
      %s116 = sphi 0, %s115
      %s130 = sphi 0, %s116
      %s134 = sphi 0, %s134
      %s136 = sphi 0, %s134
      %s137 = sphi 0, %s136
      %s151 = sphi 0, %s137
      %s155 = sphi 0, %s155
      %s157 = sphi 0, %s155
      %s158 = sphi 0, %s157
      %s172 = sphi 0, %s158
      %s178 = sphi 0, %s180
      %s181 = sphi 0, %s178
      %s182 = sphi 0, %s181
      %s198 = sphi 0, %s182
    $region4: #{tpu_custom_call.1} parent=1 // loop_header_branch
      %19 = sbr.rel (%p17) target = $region8
    $region5: #{tpu_custom_call.1} parent=1 // loop_body
      %s21 = ssub.s32 %s16, 1
      %s22 = ssub.s32 %s16, 2
      %s23 = sadd.s32 %s16, 1
      %s24 = ssub.s32 %s16, %s23
      %p25 = scmp.eq.s32.totalorder %s24, 0
      %s27 = sadd.s32 %s26, 1
      %s28 = scalar_select %p25, %s26, %s27
      %p31 = pneg %p25
      %p32 = scmp.eq.s32.totalorder %s16, 1
      %p33 = por %p31, %p32
      %p34 = scmp.ne.s32.totalorder %s26, %s29
      %p35 = scmp.eq.s32.totalorder %s16, 0
      %p36 = por %p34, %p35
      %p37 = scmp.ne.s32.totalorder %s26, %s29
      %p38 = scmp.eq.s32.totalorder %s21, 1
      %p39 = por %p37, %p38
      %p40 = scmp.ne.s32.totalorder %s29, %s30
      %p41 = scmp.eq.s32.totalorder %s21, 0
      %p42 = por %p40, %p41
      %p43 = scmp.ne.s32.totalorder %s29, %s30
      %p44 = scmp.eq.s32.totalorder %s22, 1
      %p45 = por %p43, %p44
      %p47 = scmp.ne.s32.totalorder %s30, %s46
      %p48 = scmp.eq.s32.totalorder %s22, 0
      %p49 = por %p47, %p48
      %s51 = sadd.s32 %s50, 1
      %p54 = scmp.eq.s32.totalorder %s16, 1
      %p55 = scmp.ne.s32.totalorder %s50, %s52
      %p56 = scmp.eq.s32.totalorder %s16, 0
      %p57 = por %p55, %p56
      %p58 = scmp.ne.s32.totalorder %s50, %s52
      %p59 = scmp.eq.s32.totalorder %s21, 1
      %p60 = por %p58, %p59
      %p61 = scmp.ne.s32.totalorder %s52, %s53
      %p62 = scmp.eq.s32.totalorder %s21, 0
      %p63 = por %p61, %p62
      %p64 = scmp.ne.s32.totalorder %s52, %s53
      %p65 = scmp.eq.s32.totalorder %s22, 1
      %p66 = por %p64, %p65
      %p68 = scmp.ne.s32.totalorder %s53, %s67
      %p69 = scmp.eq.s32.totalorder %s22, 0
      %p70 = por %p68, %p69
      %s72 = sadd.s32 %s71, 1
      %p75 = scmp.eq.s32.totalorder %s16, 1
      %p76 = scmp.ne.s32.totalorder %s71, %s73
      %p77 = scmp.eq.s32.totalorder %s16, 0
      %p78 = por %p76, %p77
      %p79 = scmp.ne.s32.totalorder %s71, %s73
      %p80 = scmp.eq.s32.totalorder %s21, 1
      %p81 = por %p79, %p80
      %p82 = scmp.ne.s32.totalorder %s73, %s74
      %p83 = scmp.eq.s32.totalorder %s21, 0
      %p84 = por %p82, %p83
      %p85 = scmp.ne.s32.totalorder %s73, %s74
      %p86 = scmp.eq.s32.totalorder %s22, 1
      %p87 = por %p85, %p86
      %p89 = scmp.ne.s32.totalorder %s74, %s88
      %p90 = scmp.eq.s32.totalorder %s22, 0
      %p91 = por %p89, %p90
      %s93 = sadd.s32 %s92, 1
      %p96 = scmp.eq.s32.totalorder %s16, 1
      %p97 = scmp.ne.s32.totalorder %s92, %s94
      %p98 = scmp.eq.s32.totalorder %s16, 0
      %p99 = por %p97, %p98
      %p100 = scmp.ne.s32.totalorder %s92, %s94
      %p101 = scmp.eq.s32.totalorder %s21, 1
      %p102 = por %p100, %p101
      %p103 = scmp.ne.s32.totalorder %s94, %s95
      %p104 = scmp.eq.s32.totalorder %s21, 0
      %p105 = por %p103, %p104
      %p106 = scmp.ne.s32.totalorder %s94, %s95
      %p107 = scmp.eq.s32.totalorder %s22, 1
      %p108 = por %p106, %p107
      %p110 = scmp.ne.s32.totalorder %s95, %s109
      %p111 = scmp.eq.s32.totalorder %s22, 0
      %p112 = por %p110, %p111
      %s114 = sadd.s32 %s113, 1
      %p117 = scmp.eq.s32.totalorder %s16, 1
      %p118 = scmp.ne.s32.totalorder %s113, %s115
      %p119 = scmp.eq.s32.totalorder %s16, 0
      %p120 = por %p118, %p119
      %p121 = scmp.ne.s32.totalorder %s113, %s115
      %p122 = scmp.eq.s32.totalorder %s21, 1
      %p123 = por %p121, %p122
      %p124 = scmp.ne.s32.totalorder %s115, %s116
      %p125 = scmp.eq.s32.totalorder %s21, 0
      %p126 = por %p124, %p125
      %p127 = scmp.ne.s32.totalorder %s115, %s116
      %p128 = scmp.eq.s32.totalorder %s22, 1
      %p129 = por %p127, %p128
      %p131 = scmp.ne.s32.totalorder %s116, %s130
      %p132 = scmp.eq.s32.totalorder %s22, 0
      %p133 = por %p131, %p132
      %s135 = sadd.s32 %s134, 1
      %p138 = scmp.eq.s32.totalorder %s16, 1
      %p139 = scmp.ne.s32.totalorder %s134, %s136
      %p140 = scmp.eq.s32.totalorder %s16, 0
      %p141 = por %p139, %p140
      %p142 = scmp.ne.s32.totalorder %s134, %s136
      %p143 = scmp.eq.s32.totalorder %s21, 1
      %p144 = por %p142, %p143
      %p145 = scmp.ne.s32.totalorder %s136, %s137
      %p146 = scmp.eq.s32.totalorder %s21, 0
      %p147 = por %p145, %p146
      %p148 = scmp.ne.s32.totalorder %s136, %s137
      %p149 = scmp.eq.s32.totalorder %s22, 1
      %p150 = por %p148, %p149
      %p152 = scmp.ne.s32.totalorder %s137, %s151
      %p153 = scmp.eq.s32.totalorder %s22, 0
      %p154 = por %p152, %p153
      %s156 = sadd.s32 %s155, 1
      %p159 = scmp.eq.s32.totalorder %s16, 1
      %p160 = scmp.ne.s32.totalorder %s155, %s157
      %p161 = scmp.eq.s32.totalorder %s16, 0
      %p162 = por %p160, %p161
      %p163 = scmp.ne.s32.totalorder %s155, %s157
      %p164 = scmp.eq.s32.totalorder %s21, 1
      %p165 = por %p163, %p164
      %p166 = scmp.ne.s32.totalorder %s157, %s158
      %p167 = scmp.eq.s32.totalorder %s21, 0
      %p168 = por %p166, %p167
      %p169 = scmp.ne.s32.totalorder %s157, %s158
      %p170 = scmp.eq.s32.totalorder %s22, 1
      %p171 = por %p169, %p170
      %p173 = scmp.ne.s32.totalorder %s158, %s172
      %p174 = scmp.eq.s32.totalorder %s22, 0
      %p175 = por %p173, %p174
      %s176 = ssub.s32 %s16, %s23
      %p177 = scmp.eq.s32.totalorder %s176, 0
      %s179 = sadd.s32 %s178, 1
      %s180 = scalar_select %p177, %s178, %s179
      %p183 = pneg %p177
      %p184 = scmp.eq.s32.totalorder %s16, 1
      %p185 = por %p183, %p184
      %p186 = scmp.ne.s32.totalorder %s178, %s181
      %p187 = scmp.eq.s32.totalorder %s16, 0
      %p188 = por %p186, %p187
      %p189 = scmp.ne.s32.totalorder %s178, %s181
      %p190 = scmp.eq.s32.totalorder %s21, 1
      %p191 = por %p189, %p190
      %p192 = scmp.ne.s32.totalorder %s181, %s182
      %p193 = scmp.eq.s32.totalorder %s21, 0
      %p194 = por %p192, %p193
      %p195 = scmp.ne.s32.totalorder %s181, %s182
      %p196 = scmp.eq.s32.totalorder %s22, 1
      %p197 = por %p195, %p196
      %p199 = scmp.ne.s32.totalorder %s182, %s198
      %p200 = scmp.eq.s32.totalorder %s22, 0
      %p201 = por %p199, %p200
      %p202 = scmp.le.s32.totalorder 1, %s16
      %p203 = scmp.lt.s32.totalorder %s16, 3
      %p204 = pnand %p202, %p203
      %p205 = pneg %p204
      // Predicated region
      $region9: #{tpu_custom_call.1} parent=5 // pred_check
        _
      $region10: #{tpu_custom_call.1} parent=5 // pred_check_branch
        %207 = sbr.rel (%p204) target = $region12
      $region11: #{tpu_custom_call.1} parent=5 // pred_region
        %s208 = ssub.s32 %s16, 1
        // Predicated region
        $region13: #{tpu_custom_call.1} parent=11 // pred_check
          %p209 = pneg %p63
        $region14: #{tpu_custom_call.1} parent=11 // pred_check_branch
          %211 = sbr.rel (%p209) target = $region16
        $region15: #{tpu_custom_call.1} parent=11 // pred_region
          _
        $region16: #{tpu_custom_call.1} parent=11 // pred_fallthru
          _
        // Predicated region
        $region17: #{tpu_custom_call.1} parent=11 // pred_check
          %p212 = pneg %p84
        $region18: #{tpu_custom_call.1} parent=11 // pred_check_branch
          %214 = sbr.rel (%p212) target = $region20
        $region19: #{tpu_custom_call.1} parent=11 // pred_region
          _
        $region20: #{tpu_custom_call.1} parent=11 // pred_fallthru
          _
        // Predicated region
        $region21: #{tpu_custom_call.1} parent=11 // pred_check
          %p215 = pneg %p105
        $region22: #{tpu_custom_call.1} parent=11 // pred_check_branch
          %217 = sbr.rel (%p215) target = $region24
        $region23: #{tpu_custom_call.1} parent=11 // pred_region
          _
        $region24: #{tpu_custom_call.1} parent=11 // pred_fallthru
          _
        // Predicated region
        $region25: #{tpu_custom_call.1} parent=11 // pred_check
          %p218 = pneg %p126
        $region26: #{tpu_custom_call.1} parent=11 // pred_check_branch
          %220 = sbr.rel (%p218) target = $region28
        $region27: #{tpu_custom_call.1} parent=11 // pred_region
          _
        $region28: #{tpu_custom_call.1} parent=11 // pred_fallthru
          _
        // Predicated region
        $region29: #{tpu_custom_call.1} parent=11 // pred_check
          %p221 = pneg %p147
        $region30: #{tpu_custom_call.1} parent=11 // pred_check_branch
          %223 = sbr.rel (%p221) target = $region32
        $region31: #{tpu_custom_call.1} parent=11 // pred_region
          _
        $region32: #{tpu_custom_call.1} parent=11 // pred_fallthru
          _
        // Predicated region
        $region33: #{tpu_custom_call.1} parent=11 // pred_check
          %p224 = pneg %p168
        $region34: #{tpu_custom_call.1} parent=11 // pred_check_branch
          %226 = sbr.rel (%p224) target = $region36
        $region35: #{tpu_custom_call.1} parent=11 // pred_region
          _
        $region36: #{tpu_custom_call.1} parent=11 // pred_fallthru
          _
      $region12: #{tpu_custom_call.1} parent=5 // pred_fallthru
        _
      %p227 = scmp.lt.s32.totalorder %s16, 2
      // Predicated region
      $region37: #{tpu_custom_call.1} parent=5 // pred_check
        %p228 = pneg %p227
      $region38: #{tpu_custom_call.1} parent=5 // pred_check_branch
        %230 = sbr.rel (%p228) target = $region40
      $region39: #{tpu_custom_call.1} parent=5 // pred_region
        // Predicated region
        $region41: #{tpu_custom_call.1} parent=39 // pred_check
          %p231 = pneg %p36
        $region42: #{tpu_custom_call.1} parent=39 // pred_check_branch
          %233 = sbr.rel (%p231) target = $region44
        $region43: #{tpu_custom_call.1} parent=39 // pred_region
          %p234 = scmp.lt.s32.totalorder %s16, 1
          %s235 = scalar_select %p234, %s16, 1
          %s236 = smul.addr %s235, 8
          %s237 = scalar_lea.vmem %s0, %s236
        $region44: #{tpu_custom_call.1} parent=39 // pred_fallthru
          _
      $region40: #{tpu_custom_call.1} parent=5 // pred_fallthru
        _
      %p238 = scmp.le.s32.totalorder 1, %s16
      %p239 = scmp.lt.s32.totalorder %s16, 3
      %p240 = pnand %p238, %p239
      %p241 = pneg %p240
      // Predicated region
      $region45: #{tpu_custom_call.1} parent=5 // pred_check
        _
      $region46: #{tpu_custom_call.1} parent=5 // pred_check_branch
        %243 = sbr.rel (%p240) target = $region48
      $region47: #{tpu_custom_call.1} parent=5 // pred_region
        %s244 = ssub.s32 %s16, 1
        %p245 = scmp.lt.s32.totalorder %s21, 1
        %s246 = scalar_select %p245, %s21, 1
        %s247 = smul.addr %s246, 8
        %s248 = scalar_lea.vmem %s0, %s247
        %p249 = pneg %p42
        %p250 = pneg %p39
        %p251 = pneg %p63
        %p252 = pneg %p60
        %p253 = pneg %p84
        %p254 = pneg %p81
        %p255 = pneg %p105
        %p256 = pneg %p102
        %p257 = pneg %p126
        %p258 = pneg %p123
        %p259 = pneg %p147
        %p260 = pneg %p144
        %p261 = pneg %p168
        %p262 = pneg %p165
        %p263 = pneg %p194
        %p264 = pneg %p191
        %s265 = sand.u32 %s181, 1
        %s266 = scalar_lea.sflag [#allocation3], %s265
        %s267 = sand.u32 %s181, 1
        %s268 = smul.addr %s267, 8
        %s269 = scalar_lea.vmem [#allocation2], %s268
        %p270 = scmp.lt.s32.totalorder %s21, 1
        %s271 = scalar_select %p270, %s21, 1
        %s272 = smul.addr %s271, 8
        %s273 = scalar_lea.vmem %s0, %s272
        %v274 = vld [vmem:[%s273] sm:$0xff]
        %v275 = vld [vmem:[%s1] sm:$0xff]
        %v276 = vld [vmem:[%s1 + $0x8] sm:$0xff]
        %v277 = vld [vmem:[%s1 + $0x10] sm:$0xff]
        %v278 = vld [vmem:[%s1 + $0x18] sm:$0xff]
        %v279 = vld [vmem:[%s2] sm:$0x1]
        %v281 = vlaneseq
        %v282 = vshrl.u32 %v281, 7
        %v283 = vsub.s32 0, %v282
        %v284 = vrot.slane %v279, %v283
        %vm286 = vcmask 261120
        %v288 = vsel %vm286, %v274, 0
        %290 = vmatprep.subr.mxu0 0.0
        %291 = vmatpush1.msra.mxu0 %v275
        %292 = vmatprep.subr.mxu0 0.0
        %293 = vmatpush1.msra.mxu0 %v276
        %294 = vmatprep.subr.mxu0 0.0
        %295 = vmatpush1.msra.mxu0 %v277
        %296 = vmatprep.subr.mxu0 0.0
        %297 = vmatpush1.msra.mxu0 %v278
        %298 = vmatprep.subr.mxu0 0.0
        %299 = vmatpush1.msra.mxu0 0.0
        %300 = vmatprep.subr.mxu0 0.0
        %301 = vmatpush1.msra.mxu0 0.0
        %302 = vmatprep.subr.mxu0 0.0
        %303 = vmatpush1.msra.mxu0 0.0
        %304 = vmatprep.subr.mxu0 0.0
        %305 = vmatpush1.msra.mxu0 0.0
        %306 = vmatprep.subr.mxu0 0.0
        %307 = vmatpush1.msra.mxu0 0.0
        %308 = vmatprep.subr.mxu0 0.0
        %309 = vmatpush1.msra.mxu0 0.0
        %310 = vmatprep.subr.mxu0 0.0
        %311 = vmatpush1.msra.mxu0 0.0
        %312 = vmatprep.subr.mxu0 0.0
        %313 = vmatpush1.msra.mxu0 0.0
        %314 = vmatprep.subr.mxu0 0.0
        %315 = vmatpush1.msra.mxu0 0.0
        %316 = vmatprep.subr.mxu0 0.0
        %317 = vmatpush1.msra.mxu0 0.0
        %318 = vmatprep.subr.mxu0 0.0
        %319 = vmatpush1.msra.mxu0 0.0
        %320 = vmatprep.subr.mxu0 0.0
        %321 = vmatpush1.msra.mxu0 0.0
        %322 = vmatprep.subr.mxu0 0.0
        %323 = vmatpush1.msra.mxu0 0.0
        %324 = vmatprep.subr.mxu0 0.0
        %325 = vmatpush1.msra.mxu0 0.0
        %326 = vmatprep.subr.mxu0 0.0
        %327 = vmatpush1.msra.mxu0 0.0
        %328 = vmatprep.subr.mxu0 0.0
        %329 = vmatpush1.msra.mxu0 0.0
        %330 = vmatprep.subr.mxu0 0.0
        %331 = vmatpush1.msra.mxu0 0.0
        %332 = vmatprep.subr.mxu0 0.0
        %333 = vmatpush1.msra.mxu0 0.0
        %334 = vmatprep.subr.mxu0 0.0
        %335 = vmatpush1.msra.mxu0 0.0
        %336 = vmatprep.subr.mxu0 0.0
        %337 = vmatpush1.msra.mxu0 0.0
        %338 = vmatprep.subr.mxu0 0.0
        %339 = vmatpush1.msra.mxu0 0.0
        %340 = vmatprep.subr.mxu0 0.0
        %341 = vmatpush1.msra.mxu0 0.0
        %342 = vmatprep.subr.mxu0 0.0
        %343 = vmatpush1.msra.mxu0 0.0
        %344 = vmatprep.subr.mxu0 0.0
        %345 = vmatpush1.msra.mxu0 0.0
        %346 = vmatprep.subr.mxu0 0.0
        %347 = vmatpush1.msra.mxu0 0.0
        %348 = vmatprep.subr.mxu0 0.0
        %349 = vmatpush1.msra.mxu0 0.0
        %350 = vmatprep.subr.mxu0 0.0
        %351 = vmatpush1.msra.mxu0 0.0
        %352 = vmatprep.subr.mxu0 0.0
        %353 = vmatpush1.msra.mxu0 0.0
        %354 = vmatprep.mubr.f32.mxu0 0.0
        %355 = vmatmul.mubr.f32.gmra.mrb[0].mxu0 %v288
        %v356 = vpop.f32.mrb[0].mxu0
        %v357 = vadd.f32 %v284, %v356
        %v358 = vpop.f32.mrb[0].mxu0
        %359 = vdwg.mxu0
        %v360 = vmax.f32 %v357, 0.0
        %v361 = vld [vmem:[%s3] sm:$0xff]
        %v362 = vld [vmem:[%s3 + $0x8] sm:$0xff]
        %v363 = vld [vmem:[%s3 + $0x10] sm:$0xff]
        %v364 = vld [vmem:[%s3 + $0x18] sm:$0xff]
        %v365 = vld [vmem:[%s3 + $0x20] sm:$0xff]
        %v366 = vld [vmem:[%s3 + $0x28] sm:$0xff]
        %v367 = vld [vmem:[%s3 + $0x30] sm:$0xff]
        %v368 = vld [vmem:[%s3 + $0x38] sm:$0xff]
        %vm369 = vcmask 523264
        %v371 = vsel %vm369, %v360, 0
        %373 = vmatprep.subr.mxu0 0.0
        %374 = vmatpush1.msra.mxu0 %v361
        %375 = vmatprep.subr.mxu0 0.0
        %376 = vmatpush1.msra.mxu0 %v362
        %377 = vmatprep.subr.mxu0 0.0
        %378 = vmatpush1.msra.mxu0 %v363
        %379 = vmatprep.subr.mxu0 0.0
        %380 = vmatpush1.msra.mxu0 %v364
        %381 = vmatprep.subr.mxu0 0.0
        %382 = vmatpush1.msra.mxu0 %v365
        %383 = vmatprep.subr.mxu0 0.0
        %384 = vmatpush1.msra.mxu0 %v366
        %385 = vmatprep.subr.mxu0 0.0
        %386 = vmatpush1.msra.mxu0 %v367
        %387 = vmatprep.subr.mxu0 0.0
        %388 = vmatpush1.msra.mxu0 %v368
        %389 = vmatprep.subr.mxu0 0.0
        %390 = vmatpush1.msra.mxu0 0.0
        %391 = vmatprep.subr.mxu0 0.0
        %392 = vmatpush1.msra.mxu0 0.0
        %393 = vmatprep.subr.mxu0 0.0
        %394 = vmatpush1.msra.mxu0 0.0
        %395 = vmatprep.subr.mxu0 0.0
        %396 = vmatpush1.msra.mxu0 0.0
        %397 = vmatprep.subr.mxu0 0.0
        %398 = vmatpush1.msra.mxu0 0.0
        %399 = vmatprep.subr.mxu0 0.0
        %400 = vmatpush1.msra.mxu0 0.0
        %401 = vmatprep.subr.mxu0 0.0
        %402 = vmatpush1.msra.mxu0 0.0
        %403 = vmatprep.subr.mxu0 0.0
        %404 = vmatpush1.msra.mxu0 0.0
        %405 = vmatprep.subr.mxu0 0.0
        %406 = vmatpush1.msra.mxu0 0.0
        %407 = vmatprep.subr.mxu0 0.0
        %408 = vmatpush1.msra.mxu0 0.0
        %409 = vmatprep.subr.mxu0 0.0
        %410 = vmatpush1.msra.mxu0 0.0
        %411 = vmatprep.subr.mxu0 0.0
        %412 = vmatpush1.msra.mxu0 0.0
        %413 = vmatprep.subr.mxu0 0.0
        %414 = vmatpush1.msra.mxu0 0.0
        %415 = vmatprep.subr.mxu0 0.0
        %416 = vmatpush1.msra.mxu0 0.0
        %417 = vmatprep.subr.mxu0 0.0
        %418 = vmatpush1.msra.mxu0 0.0
        %419 = vmatprep.subr.mxu0 0.0
        %420 = vmatpush1.msra.mxu0 0.0
        %421 = vmatprep.subr.mxu0 0.0
        %422 = vmatpush1.msra.mxu0 0.0
        %423 = vmatprep.subr.mxu0 0.0
        %424 = vmatpush1.msra.mxu0 0.0
        %425 = vmatprep.subr.mxu0 0.0
        %426 = vmatpush1.msra.mxu0 0.0
        %427 = vmatprep.subr.mxu0 0.0
        %428 = vmatpush1.msra.mxu0 0.0
        %429 = vmatprep.subr.mxu0 0.0
        %430 = vmatpush1.msra.mxu0 0.0
        %431 = vmatprep.subr.mxu0 0.0
        %432 = vmatpush1.msra.mxu0 0.0
        %433 = vmatprep.subr.mxu0 0.0
        %434 = vmatpush1.msra.mxu0 0.0
        %435 = vmatprep.subr.mxu0 0.0
        %436 = vmatpush1.msra.mxu0 0.0
        %437 = vmatprep.mubr.f32.mxu0 0.0
        %438 = vmatmul.mubr.f32.gmra.mrb[0].mxu0 %v371
        %v439 = vpop.f32.mrb[0].mxu0
        %v440 = vadd.f32 0.0, %v439
        %v441 = vpop.f32.mrb[0].mxu0
        %442 = vdwg.mxu0
        %v443 = vadd.f32 %v274, %v440
        %v444 = vld [vmem:[%s4] sm:$0x1]
        %v446 = vlaneseq
        %v447 = vshrl.u32 %v446, 7
        %v448 = vsub.s32 0, %v447
        %v449 = vrot.slane %v444, %v448
        %v451 = vadd.f32 %v443, %v449
        %v452 = vsel %vm286, %v451, 0.0
        %453 = vadd.xlane.f32.xlu0 %v452
        %v454 = vpop.xlane.xlu0 %453
        %v455 = vmul.f32 %v454, 0.03125
        %v456 = vsub.f32 %v451, %v455
        %v457 = vmul.f32 %v456, %v456
        %v458 = vsel %vm286, %v457, 0.0
        %459 = vadd.xlane.f32.xlu0 %v458
        %v460 = vpop.xlane.xlu0 %459
        %v461 = vmul.f32 %v460, 0.03125
        %v462 = vadd.f32 %v461, 1e-06
        %v463 = vrsqrt.pop %v462
        %v464 = vmul.f32 %v456, %v463
        %v465 = vld [vmem:[%s5] sm:$0x1]
        %v467 = vlaneseq
        %v468 = vshrl.u32 %v467, 7
        %v469 = vsub.s32 0, %v468
        %v470 = vrot.slane %v465, %v469
        %v472 = vmul.f32 %v464, %v470
        %v473 = vld [vmem:[%s6] sm:$0x1]
        %v475 = vlaneseq
        %v476 = vshrl.u32 %v475, 7
        %v477 = vsub.s32 0, %v476
        %v478 = vrot.slane %v473, %v477
        %v480 = vadd.f32 %v472, %v478
        %481 = vst.msk [vmem:[%s269] sm:$0xff] %vm286, %v480
        %s482 = sand.u32 %s181, 1
        %s483 = scalar_lea.sflag [#allocation3], %s482
        %s484 = sand.u32 %s181, 1
        %s485 = smul.addr %s484, 8
        %s486 = scalar_lea.vmem [#allocation2], %s485
        // Predicated region
        $region49: #{tpu_custom_call.1} parent=47 // pred_check
          %p487 = pneg %p191
        $region50: #{tpu_custom_call.1} parent=47 // pred_check_branch
          %489 = sbr.rel (%p487) target = $region52
        $region51: #{tpu_custom_call.1} parent=47 // pred_region
          %s491 = ssub.s32 128, 128
          %492 = vsyncadd %s483, %s491
          %s493 = smul.addr %s21, 128
          %s494 = scalar_lea.hbm %s7, %s493
          %s496 = sshll.u32 %s486, 4
          %s497 = int_to_ptr.vmem [resolvable:$true] %s496
          %499 = dma.vmem_to_hbm [thread:$0]  %s497, 128, %s494, %s483
        $region52: #{tpu_custom_call.1} parent=47 // pred_fallthru
          _
      $region48: #{tpu_custom_call.1} parent=5 // pred_fallthru
        _
      %p500 = scmp.le.s32.totalorder 2, %s16
      // Predicated region
      $region53: #{tpu_custom_call.1} parent=5 // pred_check
        %p501 = pneg %p500
      $region54: #{tpu_custom_call.1} parent=5 // pred_check_branch
        %503 = sbr.rel (%p501) target = $region56
      $region55: #{tpu_custom_call.1} parent=5 // pred_region
        %s504 = ssub.s32 %s16, 2
        // Predicated region
        $region57: #{tpu_custom_call.1} parent=55 // pred_check
          %p505 = pneg %p197
        $region58: #{tpu_custom_call.1} parent=55 // pred_check_branch
          %507 = sbr.rel (%p505) target = $region60
        $region59: #{tpu_custom_call.1} parent=55 // pred_region
          %s508 = sand.u32 %s182, 1
          %s509 = scalar_lea.sflag [#allocation3], %s508
          %s510 = sand.u32 %s182, 1
          %s511 = smul.addr %s510, 8
          %s512 = scalar_lea.vmem [#allocation2], %s511
          %513 = dma.done %s509, 128
        $region60: #{tpu_custom_call.1} parent=55 // pred_fallthru
          _
      $region56: #{tpu_custom_call.1} parent=5 // pred_fallthru
        _
    $region6: #{tpu_custom_call.1} parent=1 // loop_footer
      %s20 = sadd.s32 1, %s16
    $region7: #{tpu_custom_call.1} parent=1 // loop_footer_branch
      %15 = sbr.rel target = $region3
    $region8: #{tpu_custom_call.1} parent=1 // loop_exit
      _
    %514 = vsyncpa [#allocation3], 1
    %s515 = scalar_lea.sflag [#allocation3], 1
    %516 = vsyncpa %s515, 1

// kernel: tpu_custom_call.1
$region0: #{tpu_custom_call.1}
  #allocation0 [shape = 'u32[]', space=smem, size = 0x4, offset = 0x4, fixed_abs, tag = 'smem constant byte address 0x4 - core index']
  #allocation1 [shape = 'u32[144,128]{1,0:T(1,128)}', space=vmem, size = 0x12000, scoped, tag = 'internal scratch']
  %s0 = inlined_call_operand.vmem [shape: f32[16,32], index: 0, kind: input, shape index: {}]
  %s1 = inlined_call_operand.vmem [shape: f32[32,64], index: 1, kind: input, shape index: {}]
  %s2 = inlined_call_operand.vmem [shape: f32[1,64], index: 2, kind: input, shape index: {}]
  %s3 = inlined_call_operand.vmem [shape: f32[64,32], index: 3, kind: input, shape index: {}]
  %s4 = inlined_call_operand.vmem [shape: f32[1,32], index: 4, kind: input, shape index: {}]
  %s5 = inlined_call_operand.vmem [shape: f32[1,32], index: 5, kind: input, shape index: {}]
  %s6 = inlined_call_operand.vmem [shape: f32[1,32], index: 6, kind: input, shape index: {}]
  %s7 = inlined_call_operand.hbm [shape: f32[16,32], index: 7, kind: output, shape index: {}]
  %s8 = sld [smem:[#allocation0]]
  $region61: #{tpu_custom_call.1} parent=0
    _
  %s10 = ssub.s32 1, %s8
  %s11 = scalar_select 0, %s10, %s8
  $region1: #{tpu_custom_call.1} parent=0
    #allocation2 [shape = 'u8[8192]{0}', space=vmem, size = 0x2000, scoped, tag = 'output window, operand 0']
    #allocation3 [shape = 's32[2]{0}', space=sflag, size = 0x8, scoped, tag = 'scoped memory for tpu_custom_call.1']
    %12 = vsyncpa [#allocation3], 0
    %s13 = scalar_lea.sflag [#allocation3], 1
    %14 = vsyncpa %s13, 0
    loop: start=0, step=1, limit=4
    $region2: #{tpu_custom_call.1} parent=1 // loop_pre_header
      _
    $region3: #{tpu_custom_call.1} parent=1 // loop_header
      %s16 = sphi 0, %s20
      %p17 = scmp.ge.s32.totalorder %s16, 4
      %s26 = sphi 0, %s28
      %s29 = sphi 0, %s26
      %s30 = sphi 0, %s29
      %s46 = sphi 0, %s30
      %s50 = sphi 0, %s50
      %s52 = sphi 0, %s50
      %s53 = sphi 0, %s52
      %s67 = sphi 0, %s53
      %s71 = sphi 0, %s71
      %s73 = sphi 0, %s71
      %s74 = sphi 0, %s73
      %s88 = sphi 0, %s74
      %s92 = sphi 0, %s92
      %s94 = sphi 0, %s92
      %s95 = sphi 0, %s94
      %s109 = sphi 0, %s95
      %s113 = sphi 0, %s113
      %s115 = sphi 0, %s113
      %s116 = sphi 0, %s115
      %s130 = sphi 0, %s116
      %s134 = sphi 0, %s134
      %s136 = sphi 0, %s134
      %s137 = sphi 0, %s136
      %s151 = sphi 0, %s137
      %s155 = sphi 0, %s155
      %s157 = sphi 0, %s155
      %s158 = sphi 0, %s157
      %s172 = sphi 0, %s158
      %s178 = sphi 0, %s180
      %s181 = sphi 0, %s178
      %s182 = sphi 0, %s181
      %s198 = sphi 0, %s182
    $region4: #{tpu_custom_call.1} parent=1 // loop_header_branch
      %19 = sbr.rel (%p17) target = $region8
    $region5: #{tpu_custom_call.1} parent=1 // loop_body
      %s21 = ssub.s32 %s16, 1
      %s22 = ssub.s32 %s16, 2
      %s23 = sadd.s32 %s16, 1
      %s24 = ssub.s32 %s16, %s23
      %p25 = scmp.eq.s32.totalorder %s24, 0
      %s27 = sadd.s32 %s26, 1
      %s28 = scalar_select %p25, %s26, %s27
      %p31 = pneg %p25
      %p32 = scmp.eq.s32.totalorder %s16, 1
      %p33 = por %p31, %p32
      %p34 = scmp.ne.s32.totalorder %s26, %s29
      %p35 = scmp.eq.s32.totalorder %s16, 0
      %p36 = por %p34, %p35
      %p37 = scmp.ne.s32.totalorder %s26, %s29
      %p38 = scmp.eq.s32.totalorder %s21, 1
      %p39 = por %p37, %p38
      %p40 = scmp.ne.s32.totalorder %s29, %s30
      %p41 = scmp.eq.s32.totalorder %s21, 0
      %p42 = por %p40, %p41
      %p43 = scmp.ne.s32.totalorder %s29, %s30
      %p44 = scmp.eq.s32.totalorder %s22, 1
      %p45 = por %p43, %p44
      %p47 = scmp.ne.s32.totalorder %s30, %s46
      %p48 = scmp.eq.s32.totalorder %s22, 0
      %p49 = por %p47, %p48
      %s51 = sadd.s32 %s50, 1
      %p54 = scmp.eq.s32.totalorder %s16, 1
      %p55 = scmp.ne.s32.totalorder %s50, %s52
      %p56 = scmp.eq.s32.totalorder %s16, 0
      %p57 = por %p55, %p56
      %p58 = scmp.ne.s32.totalorder %s50, %s52
      %p59 = scmp.eq.s32.totalorder %s21, 1
      %p60 = por %p58, %p59
      %p61 = scmp.ne.s32.totalorder %s52, %s53
      %p62 = scmp.eq.s32.totalorder %s21, 0
      %p63 = por %p61, %p62
      %p64 = scmp.ne.s32.totalorder %s52, %s53
      %p65 = scmp.eq.s32.totalorder %s22, 1
      %p66 = por %p64, %p65
      %p68 = scmp.ne.s32.totalorder %s53, %s67
      %p69 = scmp.eq.s32.totalorder %s22, 0
      %p70 = por %p68, %p69
      %s72 = sadd.s32 %s71, 1
      %p75 = scmp.eq.s32.totalorder %s16, 1
      %p76 = scmp.ne.s32.totalorder %s71, %s73
      %p77 = scmp.eq.s32.totalorder %s16, 0
      %p78 = por %p76, %p77
      %p79 = scmp.ne.s32.totalorder %s71, %s73
      %p80 = scmp.eq.s32.totalorder %s21, 1
      %p81 = por %p79, %p80
      %p82 = scmp.ne.s32.totalorder %s73, %s74
      %p83 = scmp.eq.s32.totalorder %s21, 0
      %p84 = por %p82, %p83
      %p85 = scmp.ne.s32.totalorder %s73, %s74
      %p86 = scmp.eq.s32.totalorder %s22, 1
      %p87 = por %p85, %p86
      %p89 = scmp.ne.s32.totalorder %s74, %s88
      %p90 = scmp.eq.s32.totalorder %s22, 0
      %p91 = por %p89, %p90
      %s93 = sadd.s32 %s92, 1
      %p96 = scmp.eq.s32.totalorder %s16, 1
      %p97 = scmp.ne.s32.totalorder %s92, %s94
      %p98 = scmp.eq.s32.totalorder %s16, 0
      %p99 = por %p97, %p98
      %p100 = scmp.ne.s32.totalorder %s92, %s94
      %p101 = scmp.eq.s32.totalorder %s21, 1
      %p102 = por %p100, %p101
      %p103 = scmp.ne.s32.totalorder %s94, %s95
      %p104 = scmp.eq.s32.totalorder %s21, 0
      %p105 = por %p103, %p104
      %p106 = scmp.ne.s32.totalorder %s94, %s95
      %p107 = scmp.eq.s32.totalorder %s22, 1
      %p108 = por %p106, %p107
      %p110 = scmp.ne.s32.totalorder %s95, %s109
      %p111 = scmp.eq.s32.totalorder %s22, 0
      %p112 = por %p110, %p111
      %s114 = sadd.s32 %s113, 1
      %p117 = scmp.eq.s32.totalorder %s16, 1
      %p118 = scmp.ne.s32.totalorder %s113, %s115
      %p119 = scmp.eq.s32.totalorder %s16, 0
      %p120 = por %p118, %p119
      %p121 = scmp.ne.s32.totalorder %s113, %s115
      %p122 = scmp.eq.s32.totalorder %s21, 1
      %p123 = por %p121, %p122
      %p124 = scmp.ne.s32.totalorder %s115, %s116
      %p125 = scmp.eq.s32.totalorder %s21, 0
      %p126 = por %p124, %p125
      %p127 = scmp.ne.s32.totalorder %s115, %s116
      %p128 = scmp.eq.s32.totalorder %s22, 1
      %p129 = por %p127, %p128
      %p131 = scmp.ne.s32.totalorder %s116, %s130
      %p132 = scmp.eq.s32.totalorder %s22, 0
      %p133 = por %p131, %p132
      %s135 = sadd.s32 %s134, 1
      %p138 = scmp.eq.s32.totalorder %s16, 1
      %p139 = scmp.ne.s32.totalorder %s134, %s136
      %p140 = scmp.eq.s32.totalorder %s16, 0
      %p141 = por %p139, %p140
      %p142 = scmp.ne.s32.totalorder %s134, %s136
      %p143 = scmp.eq.s32.totalorder %s21, 1
      %p144 = por %p142, %p143
      %p145 = scmp.ne.s32.totalorder %s136, %s137
      %p146 = scmp.eq.s32.totalorder %s21, 0
      %p147 = por %p145, %p146
      %p148 = scmp.ne.s32.totalorder %s136, %s137
      %p149 = scmp.eq.s32.totalorder %s22, 1
      %p150 = por %p148, %p149
      %p152 = scmp.ne.s32.totalorder %s137, %s151
      %p153 = scmp.eq.s32.totalorder %s22, 0
      %p154 = por %p152, %p153
      %s156 = sadd.s32 %s155, 1
      %p159 = scmp.eq.s32.totalorder %s16, 1
      %p160 = scmp.ne.s32.totalorder %s155, %s157
      %p161 = scmp.eq.s32.totalorder %s16, 0
      %p162 = por %p160, %p161
      %p163 = scmp.ne.s32.totalorder %s155, %s157
      %p164 = scmp.eq.s32.totalorder %s21, 1
      %p165 = por %p163, %p164
      %p166 = scmp.ne.s32.totalorder %s157, %s158
      %p167 = scmp.eq.s32.totalorder %s21, 0
      %p168 = por %p166, %p167
      %p169 = scmp.ne.s32.totalorder %s157, %s158
      %p170 = scmp.eq.s32.totalorder %s22, 1
      %p171 = por %p169, %p170
      %p173 = scmp.ne.s32.totalorder %s158, %s172
      %p174 = scmp.eq.s32.totalorder %s22, 0
      %p175 = por %p173, %p174
      %s176 = ssub.s32 %s16, %s23
      %p177 = scmp.eq.s32.totalorder %s176, 0
      %s179 = sadd.s32 %s178, 1
      %s180 = scalar_select %p177, %s178, %s179
      %p183 = pneg %p177
      %p184 = scmp.eq.s32.totalorder %s16, 1
      %p185 = por %p183, %p184
      %p186 = scmp.ne.s32.totalorder %s178, %s181
      %p187 = scmp.eq.s32.totalorder %s16, 0
      %p188 = por %p186, %p187
      %p189 = scmp.ne.s32.totalorder %s178, %s181
      %p190 = scmp.eq.s32.totalorder %s21, 1
      %p191 = por %p189, %p190
      %p192 = scmp.ne.s32.totalorder %s181, %s182
      %p193 = scmp.eq.s32.totalorder %s21, 0
      %p194 = por %p192, %p193
      %p195 = scmp.ne.s32.totalorder %s181, %s182
      %p196 = scmp.eq.s32.totalorder %s22, 1
      %p197 = por %p195, %p196
      %p199 = scmp.ne.s32.totalorder %s182, %s198
      %p200 = scmp.eq.s32.totalorder %s22, 0
      %p201 = por %p199, %p200
      %p202 = scmp.le.s32.totalorder 1, %s16
      %p203 = scmp.lt.s32.totalorder %s16, 3
      %p204 = pnand %p202, %p203
      %p205 = pneg %p204
      // Predicated region
      $region9: #{tpu_custom_call.1} parent=5 // pred_check
        _
      $region10: #{tpu_custom_call.1} parent=5 // pred_check_branch
        %207 = sbr.rel (%p204) target = $region12
      $region11: #{tpu_custom_call.1} parent=5 // pred_region
        %s208 = ssub.s32 %s16, 1
        // Predicated region
        $region13: #{tpu_custom_call.1} parent=11 // pred_check
          %p209 = pneg %p63
        $region14: #{tpu_custom_call.1} parent=11 // pred_check_branch
          %211 = sbr.rel (%p209) target = $region16
        $region15: #{tpu_custom_call.1} parent=11 // pred_region
          _
        $region16: #{tpu_custom_call.1} parent=11 // pred_fallthru
          _
        // Predicated region
        $region17: #{tpu_custom_call.1} parent=11 // pred_check
          %p212 = pneg %p84
        $region18: #{tpu_custom_call.1} parent=11 // pred_check_branch
          %214 = sbr.rel (%p212) target = $region20
        $region19: #{tpu_custom_call.1} parent=11 // pred_region
          _
        $region20: #{tpu_custom_call.1} parent=11 // pred_fallthru
          _
        // Predicated region
        $region21: #{tpu_custom_call.1} parent=11 // pred_check
          %p215 = pneg %p105
        $region22: #{tpu_custom_call.1} parent=11 // pred_check_branch
          %217 = sbr.rel (%p215) target = $region24
        $region23: #{tpu_custom_call.1} parent=11 // pred_region
          _
        $region24: #{tpu_custom_call.1} parent=11 // pred_fallthru
          _
        // Predicated region
        $region25: #{tpu_custom_call.1} parent=11 // pred_check
          %p218 = pneg %p126
        $region26: #{tpu_custom_call.1} parent=11 // pred_check_branch
          %220 = sbr.rel (%p218) target = $region28
        $region27: #{tpu_custom_call.1} parent=11 // pred_region
          _
        $region28: #{tpu_custom_call.1} parent=11 // pred_fallthru
          _
        // Predicated region
        $region29: #{tpu_custom_call.1} parent=11 // pred_check
          %p221 = pneg %p147
        $region30: #{tpu_custom_call.1} parent=11 // pred_check_branch
          %223 = sbr.rel (%p221) target = $region32
        $region31: #{tpu_custom_call.1} parent=11 // pred_region
          _
        $region32: #{tpu_custom_call.1} parent=11 // pred_fallthru
          _
        // Predicated region
        $region33: #{tpu_custom_call.1} parent=11 // pred_check
          %p224 = pneg %p168
        $region34: #{tpu_custom_call.1} parent=11 // pred_check_branch
          %226 = sbr.rel (%p224) target = $region36
        $region35: #{tpu_custom_call.1} parent=11 // pred_region
          _
        $region36: #{tpu_custom_call.1} parent=11 // pred_fallthru
          _
      $region12: #{tpu_custom_call.1} parent=5 // pred_fallthru
        _
      %p227 = scmp.lt.s32.totalorder %s16, 2
      // Predicated region
      $region37: #{tpu_custom_call.1} parent=5 // pred_check
        %p228 = pneg %p227
      $region38: #{tpu_custom_call.1} parent=5 // pred_check_branch
        %230 = sbr.rel (%p228) target = $region40
      $region39: #{tpu_custom_call.1} parent=5 // pred_region
        // Predicated region
        $region41: #{tpu_custom_call.1} parent=39 // pred_check
          %p231 = pneg %p36
        $region42: #{tpu_custom_call.1} parent=39 // pred_check_branch
          %233 = sbr.rel (%p231) target = $region44
        $region43: #{tpu_custom_call.1} parent=39 // pred_region
          %p234 = scmp.lt.s32.totalorder %s16, 1
          %s235 = scalar_select %p234, %s16, 1
          %s236 = smul.addr %s235, 8
          %s237 = scalar_lea.vmem %s0, %s236
        $region44: #{tpu_custom_call.1} parent=39 // pred_fallthru
          _
      $region40: #{tpu_custom_call.1} parent=5 // pred_fallthru
        _
      %p238 = scmp.le.s32.totalorder 1, %s16
      %p239 = scmp.lt.s32.totalorder %s16, 3
      %p240 = pnand %p238, %p239
      %p241 = pneg %p240
      // Predicated region
      $region45: #{tpu_custom_call.1} parent=5 // pred_check
        _
      $region46: #{tpu_custom_call.1} parent=5 // pred_check_branch
        %243 = sbr.rel (%p240) target = $region48
      $region47: #{tpu_custom_call.1} parent=5 // pred_region
        %s244 = ssub.s32 %s16, 1
        %p245 = scmp.lt.s32.totalorder %s21, 1
        %s246 = scalar_select %p245, %s21, 1
        %s247 = smul.addr %s246, 8
        %s248 = scalar_lea.vmem %s0, %s247
        %p249 = pneg %p42
        %p250 = pneg %p39
        %p251 = pneg %p63
        %p252 = pneg %p60
        %p253 = pneg %p84
        %p254 = pneg %p81
        %p255 = pneg %p105
        %p256 = pneg %p102
        %p257 = pneg %p126
        %p258 = pneg %p123
        %p259 = pneg %p147
        %p260 = pneg %p144
        %p261 = pneg %p168
        %p262 = pneg %p165
        %p263 = pneg %p194
        %p264 = pneg %p191
        %s265 = sand.u32 %s181, 1
        %s266 = scalar_lea.sflag [#allocation3], %s265
        %s267 = sand.u32 %s181, 1
        %s268 = smul.addr %s267, 8
        %s269 = scalar_lea.vmem [#allocation2], %s268
        %p270 = scmp.lt.s32.totalorder %s21, 1
        %s271 = scalar_select %p270, %s21, 1
        %s272 = smul.addr %s271, 8
        %s273 = scalar_lea.vmem %s0, %s272
        %v274 = vld [vmem:[%s273] sm:$0xff]
        %v275 = vld [vmem:[%s1] sm:$0xff]
        %v276 = vld [vmem:[%s1 + $0x8] sm:$0xff]
        %v277 = vld [vmem:[%s1 + $0x10] sm:$0xff]
        %v278 = vld [vmem:[%s1 + $0x18] sm:$0xff]
        %v279 = vld [vmem:[%s2] sm:$0x1]
        %v281 = vlaneseq
        %v282 = vshrl.u32 %v281, 7
        %v283 = vsub.s32 0, %v282
        %v284 = vrot.slane %v279, %v283
        %vm286 = vcmask 261120
        %v288 = vsel %vm286, %v274, 0
        %290 = vmatprep.subr.mxu0 0.0
        %291 = vmatpush1.msra.mxu0 %v275
        %292 = vmatprep.subr.mxu0 0.0
        %293 = vmatpush1.msra.mxu0 %v276
        %294 = vmatprep.subr.mxu0 0.0
        %295 = vmatpush1.msra.mxu0 %v277
        %296 = vmatprep.subr.mxu0 0.0
        %297 = vmatpush1.msra.mxu0 %v278
        %298 = vmatprep.subr.mxu0 0.0
        %299 = vmatpush1.msra.mxu0 0.0
        %300 = vmatprep.subr.mxu0 0.0
        %301 = vmatpush1.msra.mxu0 0.0
        %302 = vmatprep.subr.mxu0 0.0
        %303 = vmatpush1.msra.mxu0 0.0
        %304 = vmatprep.subr.mxu0 0.0
        %305 = vmatpush1.msra.mxu0 0.0
        %306 = vmatprep.subr.mxu0 0.0
        %307 = vmatpush1.msra.mxu0 0.0
        %308 = vmatprep.subr.mxu0 0.0
        %309 = vmatpush1.msra.mxu0 0.0
        %310 = vmatprep.subr.mxu0 0.0
        %311 = vmatpush1.msra.mxu0 0.0
        %312 = vmatprep.subr.mxu0 0.0
        %313 = vmatpush1.msra.mxu0 0.0
        %314 = vmatprep.subr.mxu0 0.0
        %315 = vmatpush1.msra.mxu0 0.0
        %316 = vmatprep.subr.mxu0 0.0
        %317 = vmatpush1.msra.mxu0 0.0
        %318 = vmatprep.subr.mxu0 0.0
        %319 = vmatpush1.msra.mxu0 0.0
        %320 = vmatprep.subr.mxu0 0.0
        %321 = vmatpush1.msra.mxu0 0.0
        %322 = vmatprep.subr.mxu0 0.0
        %323 = vmatpush1.msra.mxu0 0.0
        %324 = vmatprep.subr.mxu0 0.0
        %325 = vmatpush1.msra.mxu0 0.0
        %326 = vmatprep.subr.mxu0 0.0
        %327 = vmatpush1.msra.mxu0 0.0
        %328 = vmatprep.subr.mxu0 0.0
        %329 = vmatpush1.msra.mxu0 0.0
        %330 = vmatprep.subr.mxu0 0.0
        %331 = vmatpush1.msra.mxu0 0.0
        %332 = vmatprep.subr.mxu0 0.0
        %333 = vmatpush1.msra.mxu0 0.0
        %334 = vmatprep.subr.mxu0 0.0
        %335 = vmatpush1.msra.mxu0 0.0
        %336 = vmatprep.subr.mxu0 0.0
        %337 = vmatpush1.msra.mxu0 0.0
        %338 = vmatprep.subr.mxu0 0.0
        %339 = vmatpush1.msra.mxu0 0.0
        %340 = vmatprep.subr.mxu0 0.0
        %341 = vmatpush1.msra.mxu0 0.0
        %342 = vmatprep.subr.mxu0 0.0
        %343 = vmatpush1.msra.mxu0 0.0
        %344 = vmatprep.subr.mxu0 0.0
        %345 = vmatpush1.msra.mxu0 0.0
        %346 = vmatprep.subr.mxu0 0.0
        %347 = vmatpush1.msra.mxu0 0.0
        %348 = vmatprep.subr.mxu0 0.0
        %349 = vmatpush1.msra.mxu0 0.0
        %350 = vmatprep.subr.mxu0 0.0
        %351 = vmatpush1.msra.mxu0 0.0
        %352 = vmatprep.subr.mxu0 0.0
        %353 = vmatpush1.msra.mxu0 0.0
        %354 = vmatprep.mubr.f32.mxu0 0.0
        %355 = vmatmul.mubr.f32.gmra.mrb[0].mxu0 %v288
        %v356 = vpop.f32.mrb[0].mxu0
        %v357 = vadd.f32 %v284, %v356
        %v358 = vpop.f32.mrb[0].mxu0
        %359 = vdwg.mxu0
        %v360 = vmax.f32 %v357, 0.0
        %v361 = vld [vmem:[%s3] sm:$0xff]
        %v362 = vld [vmem:[%s3 + $0x8] sm:$0xff]
        %v363 = vld [vmem:[%s3 + $0x10] sm:$0xff]
        %v364 = vld [vmem:[%s3 + $0x18] sm:$0xff]
        %v365 = vld [vmem:[%s3 + $0x20] sm:$0xff]
        %v366 = vld [vmem:[%s3 + $0x28] sm:$0xff]
        %v367 = vld [vmem:[%s3 + $0x30] sm:$0xff]
        %v368 = vld [vmem:[%s3 + $0x38] sm:$0xff]
        %vm369 = vcmask 523264
        %v371 = vsel %vm369, %v360, 0
        %373 = vmatprep.subr.mxu0 0.0
        %374 = vmatpush1.msra.mxu0 %v361
        %375 = vmatprep.subr.mxu0 0.0
        %376 = vmatpush1.msra.mxu0 %v362
        %377 = vmatprep.subr.mxu0 0.0
        %378 = vmatpush1.msra.mxu0 %v363
        %379 = vmatprep.subr.mxu0 0.0
        %380 = vmatpush1.msra.mxu0 %v364
        %381 = vmatprep.subr.mxu0 0.0
        %382 = vmatpush1.msra.mxu0 %v365
        %383 = vmatprep.subr.mxu0 0.0
        %384 = vmatpush1.msra.mxu0 %v366
        %385 = vmatprep.subr.mxu0 0.0
        %386 = vmatpush1.msra.mxu0 %v367
        %387 = vmatprep.subr.mxu0 0.0
        %388 = vmatpush1.msra.mxu0 %v368
        %389 = vmatprep.subr.mxu0 0.0
        %390 = vmatpush1.msra.mxu0 0.0
        %391 = vmatprep.subr.mxu0 0.0
        %392 = vmatpush1.msra.mxu0 0.0
        %393 = vmatprep.subr.mxu0 0.0
        %394 = vmatpush1.msra.mxu0 0.0
        %395 = vmatprep.subr.mxu0 0.0
        %396 = vmatpush1.msra.mxu0 0.0
        %397 = vmatprep.subr.mxu0 0.0
        %398 = vmatpush1.msra.mxu0 0.0
        %399 = vmatprep.subr.mxu0 0.0
        %400 = vmatpush1.msra.mxu0 0.0
        %401 = vmatprep.subr.mxu0 0.0
        %402 = vmatpush1.msra.mxu0 0.0
        %403 = vmatprep.subr.mxu0 0.0
        %404 = vmatpush1.msra.mxu0 0.0
        %405 = vmatprep.subr.mxu0 0.0
        %406 = vmatpush1.msra.mxu0 0.0
        %407 = vmatprep.subr.mxu0 0.0
        %408 = vmatpush1.msra.mxu0 0.0
        %409 = vmatprep.subr.mxu0 0.0
        %410 = vmatpush1.msra.mxu0 0.0
        %411 = vmatprep.subr.mxu0 0.0
        %412 = vmatpush1.msra.mxu0 0.0
        %413 = vmatprep.subr.mxu0 0.0
        %414 = vmatpush1.msra.mxu0 0.0
        %415 = vmatprep.subr.mxu0 0.0
        %416 = vmatpush1.msra.mxu0 0.0
        %417 = vmatprep.subr.mxu0 0.0
        %418 = vmatpush1.msra.mxu0 0.0
        %419 = vmatprep.subr.mxu0 0.0
        %420 = vmatpush1.msra.mxu0 0.0
        %421 = vmatprep.subr.mxu0 0.0
        %422 = vmatpush1.msra.mxu0 0.0
        %423 = vmatprep.subr.mxu0 0.0
        %424 = vmatpush1.msra.mxu0 0.0
        %425 = vmatprep.subr.mxu0 0.0
        %426 = vmatpush1.msra.mxu0 0.0
        %427 = vmatprep.subr.mxu0 0.0
        %428 = vmatpush1.msra.mxu0 0.0
        %429 = vmatprep.subr.mxu0 0.0
        %430 = vmatpush1.msra.mxu0 0.0
        %431 = vmatprep.subr.mxu0 0.0
        %432 = vmatpush1.msra.mxu0 0.0
        %433 = vmatprep.subr.mxu0 0.0
        %434 = vmatpush1.msra.mxu0 0.0
        %435 = vmatprep.subr.mxu0 0.0
        %436 = vmatpush1.msra.mxu0 0.0
        %437 = vmatprep.mubr.f32.mxu0 0.0
        %438 = vmatmul.mubr.f32.gmra.mrb[0].mxu0 %v371
        %v439 = vpop.f32.mrb[0].mxu0
        %v440 = vadd.f32 0.0, %v439
        %v441 = vpop.f32.mrb[0].mxu0
        %442 = vdwg.mxu0
        %v443 = vadd.f32 %v274, %v440
        %v444 = vld [vmem:[%s4] sm:$0x1]
        %v446 = vlaneseq
        %v447 = vshrl.u32 %v446, 7
        %v448 = vsub.s32 0, %v447
        %v449 = vrot.slane %v444, %v448
        %v451 = vadd.f32 %v443, %v449
        %v452 = vsel %vm286, %v451, 0.0
        %453 = vadd.xlane.f32.xlu0 %v452
        %v454 = vpop.xlane.xlu0 %453
        %v455 = vmul.f32 %v454, 0.03125
        %v456 = vsub.f32 %v451, %v455
        %v457 = vmul.f32 %v456, %v456
        %v458 = vsel %vm286, %v457, 0.0
        %459 = vadd.xlane.f32.xlu0 %v458
        %v460 = vpop.xlane.xlu0 %459
        %v461 = vmul.f32 %v460, 0.03125
        %v462 = vadd.f32 %v461, 1e-06
        %v463 = vrsqrt.pop %v462
        %v464 = vmul.f32 %v456, %v463
        %v465 = vld [vmem:[%s5] sm:$0x1]
        %v467 = vlaneseq
        %v468 = vshrl.u32 %v467, 7
        %v469 = vsub.s32 0, %v468
        %v470 = vrot.slane %v465, %v469
        %v472 = vmul.f32 %v464, %v470
        %v473 = vld [vmem:[%s6] sm:$0x1]
        %v475 = vlaneseq
        %v476 = vshrl.u32 %v475, 7
        %v477 = vsub.s32 0, %v476
        %v478 = vrot.slane %v473, %v477
        %v480 = vadd.f32 %v472, %v478
        %481 = vst.msk [vmem:[%s269] sm:$0xff] %vm286, %v480
        %s482 = sand.u32 %s181, 1
        %s483 = scalar_lea.sflag [#allocation3], %s482
        %s484 = sand.u32 %s181, 1
        %s485 = smul.addr %s484, 8
        %s486 = scalar_lea.vmem [#allocation2], %s485
        // Predicated region
        $region49: #{tpu_custom_call.1} parent=47 // pred_check
          %p487 = pneg %p191
        $region50: #{tpu_custom_call.1} parent=47 // pred_check_branch
          %489 = sbr.rel (%p487) target = $region52
        $region51: #{tpu_custom_call.1} parent=47 // pred_region
          %s491 = ssub.s32 128, 128
          %492 = vsyncadd %s483, %s491
          %s493 = smul.addr %s21, 128
          %s494 = scalar_lea.hbm %s7, %s493
          %s496 = sshll.u32 %s486, 4
          %s497 = int_to_ptr.vmem [resolvable:$true] %s496
          %499 = dma.vmem_to_hbm [thread:$0]  %s497, 128, %s494, %s483
        $region52: #{tpu_custom_call.1} parent=47 // pred_fallthru
          _
      $region48: #{tpu_custom_call.1} parent=5 // pred_fallthru
        _
      %p500 = scmp.le.s32.totalorder 2, %s16
      // Predicated region
      $region53: #{tpu_custom_call.1} parent=5 // pred_check
        %p501 = pneg %p500
      $region54: #{tpu_custom_call.1} parent=5 // pred_check_branch
        %503 = sbr.rel (%p501) target = $region56
      $region55: #{tpu_custom_call.1} parent=5 // pred_region
        %s504 = ssub.s32 %s16, 2
        // Predicated region
        $region57: #{tpu_custom_call.1} parent=55 // pred_check
          %p505 = pneg %p197
        $region58: #{tpu_custom_call.1} parent=55 // pred_check_branch
          %507 = sbr.rel (%p505) target = $region60
        $region59: #{tpu_custom_call.1} parent=55 // pred_region
          %s508 = sand.u32 %s182, 1
          %s509 = scalar_lea.sflag [#allocation3], %s508
          %s510 = sand.u32 %s182, 1
          %s511 = smul.addr %s510, 8
          %s512 = scalar_lea.vmem [#allocation2], %s511
          %513 = dma.done %s509, 128
        $region60: #{tpu_custom_call.1} parent=55 // pred_fallthru
          _
      $region56: #{tpu_custom_call.1} parent=5 // pred_fallthru
        _
    $region6: #{tpu_custom_call.1} parent=1 // loop_footer
      %s20 = sadd.s32 1, %s16
    $region7: #{tpu_custom_call.1} parent=1 // loop_footer_branch
      %15 = sbr.rel target = $region3
    $region8: #{tpu_custom_call.1} parent=1 // loop_exit
      _
    %514 = vsyncpa [#allocation3], 1
    %s515 = scalar_lea.sflag [#allocation3], 1
    %516 = vsyncpa %s515, 1

</llo_original>
